<compile_context>
chip_gen: v7x
topology: tpu7x:2x2x1
jax: 0.10.0
libtpu: 0.0.40
codegen_flags: <defaults>
</compile_context>

<pallas_src>
import jax
import jax.numpy as jnp
from jax.experimental import pallas as pl
from jax.experimental.pallas import tpu as pltpu


def _round_up(x, m):
    return ((x + m - 1) // m) * m


def _round_down(x, m):
    return (x // m) * m


# --------------------------------------------------------------------------
# Kernels
# --------------------------------------------------------------------------

def _mlp_resident_kernel(x_ref, w1_ref, b1_ref, w2_ref, b2_ref, o_ref):
    """W1 fully VMEM-resident: grid = (batch_tiles,). One fused pass per tile."""
    h = jnp.dot(x_ref[...], w1_ref[...], preferred_element_type=jnp.float32)
    h = jnp.maximum(h + b1_ref[...].astype(jnp.float32), 0.0)
    y = jnp.dot(h.astype(w2_ref.dtype), w2_ref[...],
                preferred_element_type=jnp.float32)
    o_ref[...] = (y + b2_ref[...].astype(jnp.float32)).astype(o_ref.dtype)


def _mlp_stream_kernel(x_ref, w1_ref, b1_ref, w2_ref, b2_ref, o_ref, acc_ref):
    """K-streaming: grid = (batch_tiles, k_tiles); hidden_dim reduction is last."""
    k = pl.program_id(1)

    @pl.when(k == 0)
    def _init():
        acc_ref[...] = jnp.zeros_like(acc_ref)

    # Partial first matmul: (TB, TK) @ (TK, 512), f32 accumulation on the MXU.
    acc_ref[...] += jnp.dot(x_ref[...], w1_ref[...],
                            preferred_element_type=jnp.float32)

    @pl.when(k == pl.num_programs(1) - 1)
    def _epilogue():
        h = jnp.maximum(acc_ref[...] + b1_ref[...].astype(jnp.float32), 0.0)
        y = jnp.dot(h.astype(w2_ref.dtype), w2_ref[...],
                    preferred_element_type=jnp.float32)
        o_ref[...] = (y + b2_ref[...].astype(jnp.float32)).astype(o_ref.dtype)


# --------------------------------------------------------------------------
# Wrapper
# --------------------------------------------------------------------------

def siamese_probe_forward(x, w1, b1, w2, b2, *, tb=None, tk=None,
                          w1_resident_bytes=8 << 20):
    """Fused MLP forward: relu(x @ w1 + b1) @ w2 + b2.

    x: (B, H); w1: (H, M); b1: (1, M); w2: (M, O); b2: (1, O)   (M = 512).
    Matches torch.nn.Linear semantics with weights stored transposed (in, out).
    Weights/activations may be f32 or bf16; accumulation is always f32.
    """
    B, H = x.shape
    M = w1.shape[1]
    O = w2.shape[1]
    itemsize = x.dtype.itemsize
    w_item = w1.dtype.itemsize
    sub = 8 if itemsize >= 4 else 16          # sublane packing: f32 -> 8, bf16 -> 16

    # ---- lane (128) alignment on hidden_dim / out_dim ----------------------
    Hp = _round_up(H, 128)                    # only pads when H % 128 != 0
    Op = _round_up(O, 128)                    # lane-dense output/W2 blocks

    resident = (Hp * M * w_item) <= w1_resident_bytes

    # ---- K tile (streaming path only) --------------------------------------
    if resident:
        tk_sel = Hp
    else:
        tk_max = max(128, _round_down(tk if tk is not None else 2048, 128))
        # Largest multiple of 128 that divides Hp and is <= tk_max: the last K
        # slab is never ragged, so W1 needs no padding beyond 128-row alignment.
        n = Hp // 128
        d = min(n, tk_max // 128)
        while n % d:
            d -= 1
        tk_sel = 128 * d

    # ---- batch tile ---------------------------------------------------------
    b_aligned = _round_up(B, sub)
    tb_max = tb if tb is not None else (256 if resident else 512)
    tb_sel = max(sub, min(_round_up(tb_max, sub), b_aligned))
    # Keep the double-buffered x tile under ~8 MiB of VMEM.
    x_cap = max(sub, _round_down((8 << 20) // max(1, 2 * tk_sel * itemsize), sub))
    tb_sel = max(sub, min(tb_sel, x_cap))
    if resident and b_aligned >= 2 * sub:
        # >=2 batch tiles so the "parallel" axis shards across v7x's 2 TensorCores.
        # Free on the resident path: W1 is fetched once regardless of tile count.
        tb_sel = max(sub, min(tb_sel, _round_up((b_aligned + 1) // 2, sub)))
    Bp = _round_up(B, tb_sel)
    n_bt = Bp // tb_sel

    # ---- padding (zeros are exact no-ops for the matmuls) ------------------
    pad_b, pad_h, pad_o = Bp - B, Hp - H, Op - O
    if pad_b or pad_h:
        x = jnp.pad(x, ((0, pad_b), (0, pad_h)))
    if pad_h:
        # Only when H % 128 != 0 (<= 127 rows). For a real hot path, pad the
        # weights once outside the call and pass an aligned hidden_dim.
        w1 = jnp.pad(w1, ((0, pad_h), (0, 0)))
    if pad_o:
        w2 = jnp.pad(w2, ((0, 0), (0, pad_o)))
        b2 = jnp.pad(b2, ((0, 0), (0, pad_o)))

    # ---- VMEM budget / compiler params --------------------------------------
    if resident:
        vmem_est = 2 * (tb_sel * Hp * itemsize + Hp * M * w_item + M * w_item
                        + M * Op * w_item + Op * w_item + tb_sel * Op * itemsize)
    else:
        vmem_est = (2 * (tb_sel * tk_sel * itemsize + tk_sel * M * w_item
                         + M * w_item + M * Op * w_item + Op * w_item
                         + tb_sel * Op * itemsize)
                    + tb_sel * M * 4)                       # f32 accumulator
    vmem_limit = min(64 << 20, max(32 << 20, int(vmem_est * 1.5) + (2 << 20)))

    # ---- cost estimate (W1 counted once total or once per batch tile) ------
    w1_bytes = Hp * M * w_item
    bytes_accessed = (Bp * Hp * itemsize
                      + (w1_bytes if resident else w1_bytes * n_bt)
                      + M * w_item + M * Op * w_item + Op * w_item
                      + Bp * Op * itemsize)
    cost = pl.CostEstimate(flops=2 * Bp * Hp * M + 2 * Bp * M * Op,
                           transcendentals=0,
                           bytes_accessed=bytes_accessed)

    if resident:
        out = pl.pallas_call(
            _mlp_resident_kernel,
            out_shape=jax.ShapeDtypeStruct((Bp, Op), x.dtype),
            grid=(n_bt,),
            in_specs=[
                pl.BlockSpec((tb_sel, Hp), lambda i: (i, 0)),   # x batch tile
                pl.BlockSpec((Hp, M), lambda i: (0, 0)),        # W1 (fetched once)
                pl.BlockSpec((1, M), lambda i: (0, 0)),         # b1
                pl.BlockSpec((M, Op), lambda i: (0, 0)),        # W2
                pl.BlockSpec((1, Op), lambda i: (0, 0)),        # b2
            ],
            out_specs=pl.BlockSpec((tb_sel, Op), lambda i: (i, 0)),
            compiler_params=pltpu.CompilerParams(
                dimension_semantics=("parallel",),
                vmem_limit_bytes=vmem_limit),
            cost_estimate=cost,
        )(x, w1, b1, w2, b2)
    else:
        out = pl.pallas_call(
            _mlp_stream_kernel,
            out_shape=jax.ShapeDtypeStruct((Bp, Op), x.dtype),
            grid=(n_bt, Hp // tk_sel),
            in_specs=[
                pl.BlockSpec((tb_sel, tk_sel), lambda i, k: (i, k)),  # x tile
                pl.BlockSpec((tk_sel, M), lambda i, k: (k, 0)),       # W1 K-slab
                pl.BlockSpec((1, M), lambda i, k: (0, 0)),            # b1
                pl.BlockSpec((M, Op), lambda i, k: (0, 0)),           # W2
                pl.BlockSpec((1, Op), lambda i, k: (0, 0)),           # b2
            ],
            out_specs=pl.BlockSpec((tb_sel, Op), lambda i, k: (i, 0)),
            scratch_shapes=[pltpu.VMEM((tb_sel, M), jnp.float32)],
            compiler_params=pltpu.CompilerParams(
                dimension_semantics=("parallel", "arbitrary"),
                vmem_limit_bytes=vmem_limit),
            cost_estimate=cost,
        )(x, w1, b1, w2, b2)

    if pad_b or pad_o:
        out = out[:B, :O]
    return out


def make_params(key, hidden_dim, out_dim, dtype=jnp.float32):
    """Deterministic synthetic init mimicking nn.Linear's uniform(-1/sqrt(fan_in), +)."""
    k1, k2, k3, k4 = jax.random.split(key, 4)
    lim1 = 1.0 / (float(hidden_dim) ** 0.5)
    lim2 = 1.0 / (512.0 ** 0.5)
    w1 = jax.random.uniform(k1, (hidden_dim, 512), dtype, -lim1, lim1)
    b1 = jax.random.uniform(k2, (1, 512), dtype, -lim1, lim1)
    w2 = jax.random.uniform(k3, (512, out_dim), dtype, -lim2, lim2)
    b2 = jax.random.uniform(k4, (1, out_dim), dtype, -lim2, lim2)
    return w1, b1, w2, b2


if __name__ == "__main__":
    key = jax.random.PRNGKey(0)
    kx, kp = jax.random.split(key)

    # --- Test 1: resident-W1 path, f32, >=2 batch tiles ---------------------
    B, H, OUT = 24, 256, 256
    x = jax.random.normal(kx, (B, H), jnp.float32)
    w1, b1, w2, b2 = make_params(kp, H, OUT, jnp.float32)
    out = jax.block_until_ready(siamese_probe_forward(x, w1, b1, w2, b2))
    ref = jnp.maximum(x @ w1 + b1, 0.0) @ w2 + b2
    assert out.shape == (B, OUT)
    assert jnp.allclose(out, ref, atol=2e-4, rtol=2e-4)

    # --- Test 2: unaligned B / H and small out_dim (O padded to 128) --------
    B2, H2, OUT2 = 10, 200, 40
    x2 = jax.random.normal(jax.random.PRNGKey(1), (B2, H2), jnp.float32)
    w1b, b1b, w2b, b2b = make_params(jax.random.PRNGKey(2), H2, OUT2, jnp.float32)
    out2 = jax.block_until_ready(siamese_probe_forward(x2, w1b, b1b, w2b, b2b))
    ref2 = jnp.maximum(x2 @ w1b + b1b, 0.0) @ w2b + b2b
    assert out2.shape == (B2, OUT2)
    assert jnp.allclose(out2, ref2, atol=2e-4, rtol=2e-4)

    # --- Test 3: forced K-streaming path (accumulator + epilogue) -----------
    B3, H3, OUT3 = 16, 1024, 256
    x3 = jax.random.normal(jax.random.PRNGKey(3), (B3, H3), jnp.float32)
    w1c, b1c, w2c, b2c = make_params(jax.random.PRNGKey(4), H3, OUT3, jnp.float32)
    out3 = jax.block_until_ready(
        siamese_probe_forward(x3, w1c, b1c, w2c, b2c, tk=256, w1_resident_bytes=0))
    ref3 = jnp.maximum(x3 @ w1c + b1c, 0.0) @ w2c + b2c
    assert out3.shape == (B3, OUT3)
    assert jnp.allclose(out3, ref3, atol=2e-4, rtol=2e-4)

    # --- Test 4: bf16 weights/activations (weight-bandwidth-bound regime) ---
    xb = x.astype(jnp.bfloat16)
    w1h, b1h, w2h, b2h = (a.astype(jnp.bfloat16) for a in (w1, b1, w2, b2))
    out4 = jax.block_until_ready(siamese_probe_forward(xb, w1h, b1h, w2h, b2h))
    ref4 = (jnp.maximum(xb.astype(jnp.float32) @ w1h.astype(jnp.float32)
                        + b1h.astype(jnp.float32), 0.0)
            @ w2h.astype(jnp.float32) + b2h.astype(jnp.float32))
    assert out4.shape == (B, OUT)
    assert jnp.allclose(out4.astype(jnp.float32), ref4, atol=1e-1, rtol=1e-1)

    print("KERNEL_OK")
</pallas_src>

<mosaic_0001>
module attributes {stable_mosaic.version = 11 : i64} {
  func.func @_mlp_resident_kernel(%arg0: i32, %arg1: memref<16x256xf32, #tpu.memory_space<vmem>>, %arg2: memref<256x512xf32, #tpu.memory_space<vmem>>, %arg3: memref<1x512xf32, #tpu.memory_space<vmem>>, %arg4: memref<512x256xf32, #tpu.memory_space<vmem>>, %arg5: memref<1x256xf32, #tpu.memory_space<vmem>>, %arg6: memref<16x256xf32, #tpu.memory_space<vmem>>) attributes {dimension_semantics = [#tpu.dimension_semantics<parallel>], iteration_bounds = array<i64: 2>, scalar_prefetch = 0 : i64, scratch_operands = 0 : i64, tpu.core_type = #tpu.core_type<tc>, window_params = [{transform_indices = @transform_0, window_bounds = array<i64: 16, 256>}, {pipeline_mode = #tpu.pipeline_mode<synchronous>, transform_indices = @transform_1, window_bounds = array<i64: 256, 512>}, {pipeline_mode = #tpu.pipeline_mode<synchronous>, transform_indices = @transform_2, window_bounds = array<i64: 1, 512>}, {pipeline_mode = #tpu.pipeline_mode<synchronous>, transform_indices = @transform_3, window_bounds = array<i64: 512, 256>}, {pipeline_mode = #tpu.pipeline_mode<synchronous>, transform_indices = @transform_4, window_bounds = array<i64: 1, 256>}, {transform_indices = @transform_5, window_bounds = array<i64: 16, 256>}]} {
    %c0 = arith.constant 0 : index
    %c0_0 = arith.constant 0 : index
    %0 = vector.load %arg1[%c0, %c0_0] : memref<16x256xf32, #tpu.memory_space<vmem>>, vector<16x256xf32>
    %c0_1 = arith.constant 0 : index
    %c0_2 = arith.constant 0 : index
    %1 = vector.load %arg2[%c0_1, %c0_2] : memref<256x512xf32, #tpu.memory_space<vmem>>, vector<256x512xf32>
    %cst = arith.constant dense<0.000000e+00> : vector<16x512xf32>
    %2 = tpu.matmul %0, %1, %cst {dimension_numbers = #tpu.dot_dimension_numbers<[1], [0], [0], [1], [0, 0, 1, 1], [], []>} : vector<16x256xf32>, vector<256x512xf32>, vector<16x512xf32> -> vector<16x512xf32>
    %c0_3 = arith.constant 0 : index
    %c0_4 = arith.constant 0 : index
    %3 = vector.load %arg3[%c0_3, %c0_4] : memref<1x512xf32, #tpu.memory_space<vmem>>, vector<1x512xf32>
    %4 = vector.broadcast %3 : vector<1x512xf32> to vector<16x512xf32>
    %5 = arith.addf %2, %4 : vector<16x512xf32>
    %cst_5 = arith.constant 0.000000e+00 : f32
    %6 = vector.broadcast %cst_5 : f32 to vector<16x512xf32>
    %7 = arith.maximumf %5, %6 : vector<16x512xf32>
    %c0_6 = arith.constant 0 : index
    %c0_7 = arith.constant 0 : index
    %8 = vector.load %arg4[%c0_6, %c0_7] : memref<512x256xf32, #tpu.memory_space<vmem>>, vector<512x256xf32>
    %cst_8 = arith.constant dense<0.000000e+00> : vector<16x256xf32>
    %9 = tpu.matmul %7, %8, %cst_8 {dimension_numbers = #tpu.dot_dimension_numbers<[1], [0], [0], [1], [0, 0, 1, 1], [], []>} : vector<16x512xf32>, vector<512x256xf32>, vector<16x256xf32> -> vector<16x256xf32>
    %c0_9 = arith.constant 0 : index
    %c0_10 = arith.constant 0 : index
    %10 = vector.load %arg5[%c0_9, %c0_10] : memref<1x256xf32, #tpu.memory_space<vmem>>, vector<1x256xf32>
    %11 = vector.broadcast %10 : vector<1x256xf32> to vector<16x256xf32>
    %12 = arith.addf %9, %11 : vector<16x256xf32>
    %c0_11 = arith.constant 0 : index
    %c0_12 = arith.constant 0 : index
    %13 = vector.load %arg6[%c0_11, %c0_12] : memref<16x256xf32, #tpu.memory_space<vmem>>, vector<16x256xf32>
    tpu.vector_store %arg6[%c0_11, %c0_12], %12 {strides = array<i32>} : memref<16x256xf32, #tpu.memory_space<vmem>>, vector<16x256xf32>,
    return
  }
  func.func @transform_0(%arg0: i32) -> (i32, i32) {
    %c0_i32 = arith.constant 0 : i32
    %c0_i32_0 = arith.constant 0 : i32
    return %arg0, %c0_i32 : i32, i32
  }
  func.func @transform_1(%arg0: i32) -> (i32, i32) {
    %c0_i32 = arith.constant 0 : i32
    %c0_i32_0 = arith.constant 0 : i32
    %c0_i32_1 = arith.constant 0 : i32
    return %c0_i32, %c0_i32_0 : i32, i32
  }
  func.func @transform_2(%arg0: i32) -> (i32, i32) {
    %c0_i32 = arith.constant 0 : i32
    %c0_i32_0 = arith.constant 0 : i32
    %c0_i32_1 = arith.constant 0 : i32
    return %c0_i32, %c0_i32_0 : i32, i32
  }
  func.func @transform_3(%arg0: i32) -> (i32, i32) {
    %c0_i32 = arith.constant 0 : i32
    %c0_i32_0 = arith.constant 0 : i32
    %c0_i32_1 = arith.constant 0 : i32
    return %c0_i32, %c0_i32_0 : i32, i32
  }
  func.func @transform_4(%arg0: i32) -> (i32, i32) {
    %c0_i32 = arith.constant 0 : i32
    %c0_i32_0 = arith.constant 0 : i32
    %c0_i32_1 = arith.constant 0 : i32
    return %c0_i32, %c0_i32_0 : i32, i32
  }
  func.func @transform_5(%arg0: i32) -> (i32, i32) {
    %c0_i32 = arith.constant 0 : i32
    %c0_i32_0 = arith.constant 0 : i32
    return %arg0, %c0_i32 : i32, i32
  }
}

</mosaic_0001>

<llo_original>
// kernel: tpu_custom_call.1
$region0: #{tpu_custom_call.1}
  #allocation0 [shape = 'u32[]', space=smem, size = 0x4, offset = 0x4, fixed_abs, tag = 'smem constant byte address 0x4 - core index']
  #allocation1 [shape = 'u32[144,128]{1,0:T(1,128)}', space=vmem, size = 0x12000, scoped, tag = 'internal scratch']
  %s0 = inlined_call_operand.hbm [shape: f32[32,256], index: 0, kind: input, shape index: {}]
  %s1 = inlined_call_operand.hbm [shape: f32[256,512], index: 1, kind: input, shape index: {}]
  %s2 = inlined_call_operand.vmem [shape: f32[1,512], index: 2, kind: input, shape index: {}]
  %s3 = inlined_call_operand.hbm [shape: f32[512,256], index: 3, kind: input, shape index: {}]
  %s4 = inlined_call_operand.vmem [shape: f32[1,256], index: 4, kind: input, shape index: {}]
  %s5 = inlined_call_operand.hbm [shape: f32[32,256], index: 5, kind: output, shape index: {}]
  %s6 = sld [smem:[#allocation0]]
  $region65: #{tpu_custom_call.1} parent=0
    _
  %s8 = ssub.s32 1, %s6
  %s9 = scalar_select 0, %s8, %s6
  $region1: #{tpu_custom_call.1} parent=0
    #allocation2 [shape = 'u8[32768]{0}', space=vmem, size = 0x8000, scoped, tag = 'input window, operand 0']
    #allocation3 [shape = 's32[2]{0}', space=sflag, size = 0x8, scoped, tag = 'scoped memory for tpu_custom_call.1']
    #allocation4 [shape = 's32[2]{0}', space=sflag, size = 0x8, scoped, tag = 'scoped memory for tpu_custom_call.1']
    #allocation5 [shape = 'u8[524288]{0}', space=vmem, size = 0x80000, scoped, tag = 'input window, operand 1, single buffered']
    #allocation6 [shape = 's32[1]{0}', space=sflag, size = 0x4, scoped, tag = 'scoped memory for tpu_custom_call.1']
    #allocation7 [shape = 'u8[524288]{0}', space=vmem, size = 0x80000, scoped, tag = 'input window, operand 3, single buffered']
    #allocation8 [shape = 'u8[32768]{0}', space=vmem, size = 0x8000, scoped, tag = 'output window, operand 0']
    %10 = vsyncpa [#allocation3], 0
    %s11 = scalar_lea.sflag [#allocation3], 1
    %12 = vsyncpa %s11, 0
    %13 = vsyncpa [#allocation6], 0
    %14 = vsyncpa [#allocation4], 0
    %s15 = scalar_lea.sflag [#allocation4], 1
    %16 = vsyncpa %s15, 0
    loop: start=0, step=1, limit=4
    $region2: #{tpu_custom_call.1} parent=1 // loop_pre_header
      _
    $region3: #{tpu_custom_call.1} parent=1 // loop_header
      %s18 = sphi 0, %s22
      %p19 = scmp.ge.s32.totalorder %s18, 4
      %s28 = sphi 0, %s30
      %s31 = sphi 0, %s28
      %s32 = sphi 0, %s31
      %s48 = sphi 0, %s32
      %s52 = sphi 0, %s52
      %s54 = sphi 0, %s52
      %s55 = sphi 0, %s54
      %s69 = sphi 0, %s55
      %s73 = sphi 0, %s73
      %s75 = sphi 0, %s73
      %s76 = sphi 0, %s75
      %s90 = sphi 0, %s76
      %s94 = sphi 0, %s94
      %s96 = sphi 0, %s94
      %s97 = sphi 0, %s96
      %s111 = sphi 0, %s97
      %s115 = sphi 0, %s115
      %s117 = sphi 0, %s115
      %s118 = sphi 0, %s117
      %s132 = sphi 0, %s118
      %s138 = sphi 0, %s140
      %s141 = sphi 0, %s138
      %s142 = sphi 0, %s141
      %s158 = sphi 0, %s142
    $region4: #{tpu_custom_call.1} parent=1 // loop_header_branch
      %21 = sbr.rel (%p19) target = $region8
    $region5: #{tpu_custom_call.1} parent=1 // loop_body
      %s23 = ssub.s32 %s18, 1
      %s24 = ssub.s32 %s18, 2
      %s25 = sadd.s32 %s18, 1
      %s26 = ssub.s32 %s18, %s25
      %p27 = scmp.eq.s32.totalorder %s26, 0
      %s29 = sadd.s32 %s28, 1
      %s30 = scalar_select %p27, %s28, %s29
      %p33 = pneg %p27
      %p34 = scmp.eq.s32.totalorder %s18, 1
      %p35 = por %p33, %p34
      %p36 = scmp.ne.s32.totalorder %s28, %s31
      %p37 = scmp.eq.s32.totalorder %s18, 0
      %p38 = por %p36, %p37
      %p39 = scmp.ne.s32.totalorder %s28, %s31
      %p40 = scmp.eq.s32.totalorder %s23, 1
      %p41 = por %p39, %p40
      %p42 = scmp.ne.s32.totalorder %s31, %s32
      %p43 = scmp.eq.s32.totalorder %s23, 0
      %p44 = por %p42, %p43
      %p45 = scmp.ne.s32.totalorder %s31, %s32
      %p46 = scmp.eq.s32.totalorder %s24, 1
      %p47 = por %p45, %p46
      %p49 = scmp.ne.s32.totalorder %s32, %s48
      %p50 = scmp.eq.s32.totalorder %s24, 0
      %p51 = por %p49, %p50
      %s53 = sadd.s32 %s52, 1
      %p56 = scmp.eq.s32.totalorder %s18, 1
      %p57 = scmp.ne.s32.totalorder %s52, %s54
      %p58 = scmp.eq.s32.totalorder %s18, 0
      %p59 = por %p57, %p58
      %p60 = scmp.ne.s32.totalorder %s52, %s54
      %p61 = scmp.eq.s32.totalorder %s23, 1
      %p62 = por %p60, %p61
      %p63 = scmp.ne.s32.totalorder %s54, %s55
      %p64 = scmp.eq.s32.totalorder %s23, 0
      %p65 = por %p63, %p64
      %p66 = scmp.ne.s32.totalorder %s54, %s55
      %p67 = scmp.eq.s32.totalorder %s24, 1
      %p68 = por %p66, %p67
      %p70 = scmp.ne.s32.totalorder %s55, %s69
      %p71 = scmp.eq.s32.totalorder %s24, 0
      %p72 = por %p70, %p71
      %s74 = sadd.s32 %s73, 1
      %p77 = scmp.eq.s32.totalorder %s18, 1
      %p78 = scmp.ne.s32.totalorder %s73, %s75
      %p79 = scmp.eq.s32.totalorder %s18, 0
      %p80 = por %p78, %p79
      %p81 = scmp.ne.s32.totalorder %s73, %s75
      %p82 = scmp.eq.s32.totalorder %s23, 1
      %p83 = por %p81, %p82
      %p84 = scmp.ne.s32.totalorder %s75, %s76
      %p85 = scmp.eq.s32.totalorder %s23, 0
      %p86 = por %p84, %p85
      %p87 = scmp.ne.s32.totalorder %s75, %s76
      %p88 = scmp.eq.s32.totalorder %s24, 1
      %p89 = por %p87, %p88
      %p91 = scmp.ne.s32.totalorder %s76, %s90
      %p92 = scmp.eq.s32.totalorder %s24, 0
      %p93 = por %p91, %p92
      %s95 = sadd.s32 %s94, 1
      %p98 = scmp.eq.s32.totalorder %s18, 1
      %p99 = scmp.ne.s32.totalorder %s94, %s96
      %p100 = scmp.eq.s32.totalorder %s18, 0
      %p101 = por %p99, %p100
      %p102 = scmp.ne.s32.totalorder %s94, %s96
      %p103 = scmp.eq.s32.totalorder %s23, 1
      %p104 = por %p102, %p103
      %p105 = scmp.ne.s32.totalorder %s96, %s97
      %p106 = scmp.eq.s32.totalorder %s23, 0
      %p107 = por %p105, %p106
      %p108 = scmp.ne.s32.totalorder %s96, %s97
      %p109 = scmp.eq.s32.totalorder %s24, 1
      %p110 = por %p108, %p109
      %p112 = scmp.ne.s32.totalorder %s97, %s111
      %p113 = scmp.eq.s32.totalorder %s24, 0
      %p114 = por %p112, %p113
      %s116 = sadd.s32 %s115, 1
      %p119 = scmp.eq.s32.totalorder %s18, 1
      %p120 = scmp.ne.s32.totalorder %s115, %s117
      %p121 = scmp.eq.s32.totalorder %s18, 0
      %p122 = por %p120, %p121
      %p123 = scmp.ne.s32.totalorder %s115, %s117
      %p124 = scmp.eq.s32.totalorder %s23, 1
      %p125 = por %p123, %p124
      %p126 = scmp.ne.s32.totalorder %s117, %s118
      %p127 = scmp.eq.s32.totalorder %s23, 0
      %p128 = por %p126, %p127
      %p129 = scmp.ne.s32.totalorder %s117, %s118
      %p130 = scmp.eq.s32.totalorder %s24, 1
      %p131 = por %p129, %p130
      %p133 = scmp.ne.s32.totalorder %s118, %s132
      %p134 = scmp.eq.s32.totalorder %s24, 0
      %p135 = por %p133, %p134
      %s136 = ssub.s32 %s18, %s25
      %p137 = scmp.eq.s32.totalorder %s136, 0
      %s139 = sadd.s32 %s138, 1
      %s140 = scalar_select %p137, %s138, %s139
      %p143 = pneg %p137
      %p144 = scmp.eq.s32.totalorder %s18, 1
      %p145 = por %p143, %p144
      %p146 = scmp.ne.s32.totalorder %s138, %s141
      %p147 = scmp.eq.s32.totalorder %s18, 0
      %p148 = por %p146, %p147
      %p149 = scmp.ne.s32.totalorder %s138, %s141
      %p150 = scmp.eq.s32.totalorder %s23, 1
      %p151 = por %p149, %p150
      %p152 = scmp.ne.s32.totalorder %s141, %s142
      %p153 = scmp.eq.s32.totalorder %s23, 0
      %p154 = por %p152, %p153
      %p155 = scmp.ne.s32.totalorder %s141, %s142
      %p156 = scmp.eq.s32.totalorder %s24, 1
      %p157 = por %p155, %p156
      %p159 = scmp.ne.s32.totalorder %s142, %s158
      %p160 = scmp.eq.s32.totalorder %s24, 0
      %p161 = por %p159, %p160
      %p162 = scmp.le.s32.totalorder 1, %s18
      %p163 = scmp.lt.s32.totalorder %s18, 3
      %p164 = pnand %p162, %p163
      %p165 = pneg %p164
      // Predicated region
      $region9: #{tpu_custom_call.1} parent=5 // pred_check
        _
      $region10: #{tpu_custom_call.1} parent=5 // pred_check_branch
        %167 = sbr.rel (%p164) target = $region12
      $region11: #{tpu_custom_call.1} parent=5 // pred_region
        %s168 = ssub.s32 %s18, 1
        // Predicated region
        $region13: #{tpu_custom_call.1} parent=11 // pred_check
          %p169 = pneg %p65
        $region14: #{tpu_custom_call.1} parent=11 // pred_check_branch
          %171 = sbr.rel (%p169) target = $region16
        $region15: #{tpu_custom_call.1} parent=11 // pred_region
          %s173 = ssub.s32 16384, 16384
          %174 = vsyncadd [#allocation6], %s173
          %s175 = sshll.u32 [#allocation5], 4
          %s176 = int_to_ptr.vmem [resolvable:$true] %s175
          %181 = dma.hbm_to_vmem [thread:$0]  %s1, 16384, %s176, [#allocation6], 512, 512, 32
        $region16: #{tpu_custom_call.1} parent=11 // pred_fallthru
          _
        // Predicated region
        $region17: #{tpu_custom_call.1} parent=11 // pred_check
          %p182 = pneg %p86
        $region18: #{tpu_custom_call.1} parent=11 // pred_check_branch
          %184 = sbr.rel (%p182) target = $region20
        $region19: #{tpu_custom_call.1} parent=11 // pred_region
          _
        $region20: #{tpu_custom_call.1} parent=11 // pred_fallthru
          _
        // Predicated region
        $region21: #{tpu_custom_call.1} parent=11 // pred_check
          %p185 = pneg %p107
        $region22: #{tpu_custom_call.1} parent=11 // pred_check_branch
          %187 = sbr.rel (%p185) target = $region24
        $region23: #{tpu_custom_call.1} parent=11 // pred_region
          %s189 = ssub.s32 16384, 16384
          %190 = vsyncadd [#allocation6], %s189
          %s191 = sshll.u32 [#allocation7], 4
          %s192 = int_to_ptr.vmem [resolvable:$true] %s191
          %197 = dma.hbm_to_vmem [thread:$0]  %s3, 16384, %s192, [#allocation6], 256, 256, 16
        $region24: #{tpu_custom_call.1} parent=11 // pred_fallthru
          _
        // Predicated region
        $region25: #{tpu_custom_call.1} parent=11 // pred_check
          %p198 = pneg %p128
        $region26: #{tpu_custom_call.1} parent=11 // pred_check_branch
          %200 = sbr.rel (%p198) target = $region28
        $region27: #{tpu_custom_call.1} parent=11 // pred_region
          _
        $region28: #{tpu_custom_call.1} parent=11 // pred_fallthru
          _
      $region12: #{tpu_custom_call.1} parent=5 // pred_fallthru
        _
      %p201 = scmp.lt.s32.totalorder %s18, 2
      // Predicated region
      $region29: #{tpu_custom_call.1} parent=5 // pred_check
        %p202 = pneg %p201
      $region30: #{tpu_custom_call.1} parent=5 // pred_check_branch
        %204 = sbr.rel (%p202) target = $region32
      $region31: #{tpu_custom_call.1} parent=5 // pred_region
        // Predicated region
        $region33: #{tpu_custom_call.1} parent=31 // pred_check
          %p205 = pneg %p38
        $region34: #{tpu_custom_call.1} parent=31 // pred_check_branch
          %207 = sbr.rel (%p205) target = $region36
        $region35: #{tpu_custom_call.1} parent=31 // pred_region
          %s208 = sand.u32 %s28, 1
          %s209 = scalar_lea.sflag [#allocation3], %s208
          %s210 = sand.u32 %s28, 1
          %s211 = smul.addr %s210, 32
          %s212 = scalar_lea.vmem [#allocation2], %s211
          %s213 = smul.u32 2, %s18
          %s215 = ssub.s32 512, 512
          %216 = vsyncadd %s209, %s215
          %s217 = smul.addr %s213, 2
          %s218 = smul.addr %s217, 128
          %s219 = scalar_lea.hbm %s0, %s218
          %s220 = sshll.u32 %s212, 4
          %s221 = int_to_ptr.vmem [resolvable:$true] %s220
          %226 = dma.hbm_to_vmem [thread:$0]  %s219, 512, %s221, %s209, 256, 256, 16
        $region36: #{tpu_custom_call.1} parent=31 // pred_fallthru
          _
      $region32: #{tpu_custom_call.1} parent=5 // pred_fallthru
        _
      %p227 = scmp.le.s32.totalorder 1, %s18
      %p228 = scmp.lt.s32.totalorder %s18, 3
      %p229 = pnand %p227, %p228
      %p230 = pneg %p229
      // Predicated region
      $region37: #{tpu_custom_call.1} parent=5 // pred_check
        _
      $region38: #{tpu_custom_call.1} parent=5 // pred_check_branch
        %232 = sbr.rel (%p229) target = $region40
      $region39: #{tpu_custom_call.1} parent=5 // pred_region
        %s233 = ssub.s32 %s18, 1
        %s234 = sand.u32 %s31, 1
        %s235 = scalar_lea.sflag [#allocation3], %s234
        %s236 = sand.u32 %s31, 1
        %s237 = smul.addr %s236, 32
        %s238 = scalar_lea.vmem [#allocation2], %s237
        // Predicated region
        $region41: #{tpu_custom_call.1} parent=39 // pred_check
          %p239 = pneg %p44
        $region42: #{tpu_custom_call.1} parent=39 // pred_check_branch
          %241 = sbr.rel (%p239) target = $region44
        $region43: #{tpu_custom_call.1} parent=39 // pred_region
          %242 = dma.done %s235, 512
        $region44: #{tpu_custom_call.1} parent=39 // pred_fallthru
          _
        // Predicated region
        $region45: #{tpu_custom_call.1} parent=39 // pred_check
          %p243 = pneg %p65
        $region46: #{tpu_custom_call.1} parent=39 // pred_check_branch
          %245 = sbr.rel (%p243) target = $region48
        $region47: #{tpu_custom_call.1} parent=39 // pred_region
          %246 = dma.done [#allocation6], 16384
        $region48: #{tpu_custom_call.1} parent=39 // pred_fallthru
          _
        // Predicated region
        $region49: #{tpu_custom_call.1} parent=39 // pred_check
          %p247 = pneg %p107
        $region50: #{tpu_custom_call.1} parent=39 // pred_check_branch
          %249 = sbr.rel (%p247) target = $region52
        $region51: #{tpu_custom_call.1} parent=39 // pred_region
          %250 = dma.done [#allocation6], 16384
        $region52: #{tpu_custom_call.1} parent=39 // pred_fallthru
          _
        %s251 = sand.u32 %s31, 1
        %s252 = scalar_lea.sflag [#allocation3], %s251
        %s253 = sand.u32 %s31, 1
        %s254 = smul.addr %s253, 32
        %s255 = scalar_lea.vmem [#allocation2], %s254
        %p256 = pneg %p44
        %p257 = pneg %p41
        %p258 = pneg %p65
        %p259 = pneg %p62
        %p260 = pneg %p86
        %p261 = pneg %p83
        %p262 = pneg %p107
        %p263 = pneg %p104
        %p264 = pneg %p128
        %p265 = pneg %p125
        %p266 = pneg %p154
        %p267 = pneg %p151
        %s268 = sand.u32 %s141, 1
        %s269 = scalar_lea.sflag [#allocation4], %s268
        %s270 = sand.u32 %s141, 1
        %s271 = smul.addr %s270, 32
        %s272 = scalar_lea.vmem [#allocation8], %s271
        %s273 = smul.u32 2, %s23
        %s274 = smul.u32 2, %s23
        %v275 = vld [vmem:[%s238] sm:$0xff]
        %v276 = vld [vmem:[%s238 + $0x8] sm:$0xff]
        %v277 = vld [vmem:[%s238 + $0x10] sm:$0xff]
        %v278 = vld [vmem:[%s238 + $0x18] sm:$0xff]
        %v279 = vld [vmem:[#allocation5] sm:$0xff]
        %v280 = vld [vmem:[#allocation5 + $0x8] sm:$0xff]
        %v281 = vld [vmem:[#allocation5 + $0x10] sm:$0xff]
        %v282 = vld [vmem:[#allocation5 + $0x18] sm:$0xff]
        %v283 = vld [vmem:[#allocation5 + $0x20] sm:$0xff]
        %v284 = vld [vmem:[#allocation5 + $0x28] sm:$0xff]
        %v285 = vld [vmem:[#allocation5 + $0x30] sm:$0xff]
        %v286 = vld [vmem:[#allocation5 + $0x38] sm:$0xff]
        %v287 = vld [vmem:[#allocation5 + $0x40] sm:$0xff]
        %v288 = vld [vmem:[#allocation5 + $0x48] sm:$0xff]
        %v289 = vld [vmem:[#allocation5 + $0x50] sm:$0xff]
        %v290 = vld [vmem:[#allocation5 + $0x58] sm:$0xff]
        %v291 = vld [vmem:[#allocation5 + $0x60] sm:$0xff]
        %v292 = vld [vmem:[#allocation5 + $0x68] sm:$0xff]
        %v293 = vld [vmem:[#allocation5 + $0x70] sm:$0xff]
        %v294 = vld [vmem:[#allocation5 + $0x78] sm:$0xff]
        %v295 = vld [vmem:[#allocation5 + $0x80] sm:$0xff]
        %v296 = vld [vmem:[#allocation5 + $0x88] sm:$0xff]
        %v297 = vld [vmem:[#allocation5 + $0x90] sm:$0xff]
        %v298 = vld [vmem:[#allocation5 + $0x98] sm:$0xff]
        %v299 = vld [vmem:[#allocation5 + $0xa0] sm:$0xff]
        %v300 = vld [vmem:[#allocation5 + $0xa8] sm:$0xff]
        %v301 = vld [vmem:[#allocation5 + $0xb0] sm:$0xff]
        %v302 = vld [vmem:[#allocation5 + $0xb8] sm:$0xff]
        %v303 = vld [vmem:[#allocation5 + $0xc0] sm:$0xff]
        %v304 = vld [vmem:[#allocation5 + $0xc8] sm:$0xff]
        %v305 = vld [vmem:[#allocation5 + $0xd0] sm:$0xff]
        %v306 = vld [vmem:[#allocation5 + $0xd8] sm:$0xff]
        %v307 = vld [vmem:[#allocation5 + $0xe0] sm:$0xff]
        %v308 = vld [vmem:[#allocation5 + $0xe8] sm:$0xff]
        %v309 = vld [vmem:[#allocation5 + $0xf0] sm:$0xff]
        %v310 = vld [vmem:[#allocation5 + $0xf8] sm:$0xff]
        %v311 = vld [vmem:[#allocation5 + $0x100] sm:$0xff]
        %v312 = vld [vmem:[#allocation5 + $0x108] sm:$0xff]
        %v313 = vld [vmem:[#allocation5 + $0x110] sm:$0xff]
        %v314 = vld [vmem:[#allocation5 + $0x118] sm:$0xff]
        %v315 = vld [vmem:[#allocation5 + $0x120] sm:$0xff]
        %v316 = vld [vmem:[#allocation5 + $0x128] sm:$0xff]
        %v317 = vld [vmem:[#allocation5 + $0x130] sm:$0xff]
        %v318 = vld [vmem:[#allocation5 + $0x138] sm:$0xff]
        %v319 = vld [vmem:[#allocation5 + $0x140] sm:$0xff]
        %v320 = vld [vmem:[#allocation5 + $0x148] sm:$0xff]
        %v321 = vld [vmem:[#allocation5 + $0x150] sm:$0xff]
        %v322 = vld [vmem:[#allocation5 + $0x158] sm:$0xff]
        %v323 = vld [vmem:[#allocation5 + $0x160] sm:$0xff]
        %v324 = vld [vmem:[#allocation5 + $0x168] sm:$0xff]
        %v325 = vld [vmem:[#allocation5 + $0x170] sm:$0xff]
        %v326 = vld [vmem:[#allocation5 + $0x178] sm:$0xff]
        %v327 = vld [vmem:[#allocation5 + $0x180] sm:$0xff]
        %v328 = vld [vmem:[#allocation5 + $0x188] sm:$0xff]
        %v329 = vld [vmem:[#allocation5 + $0x190] sm:$0xff]
        %v330 = vld [vmem:[#allocation5 + $0x198] sm:$0xff]
        %v331 = vld [vmem:[#allocation5 + $0x1a0] sm:$0xff]
        %v332 = vld [vmem:[#allocation5 + $0x1a8] sm:$0xff]
        %v333 = vld [vmem:[#allocation5 + $0x1b0] sm:$0xff]
        %v334 = vld [vmem:[#allocation5 + $0x1b8] sm:$0xff]
        %v335 = vld [vmem:[#allocation5 + $0x1c0] sm:$0xff]
        %v336 = vld [vmem:[#allocation5 + $0x1c8] sm:$0xff]
        %v337 = vld [vmem:[#allocation5 + $0x1d0] sm:$0xff]
        %v338 = vld [vmem:[#allocation5 + $0x1d8] sm:$0xff]
        %v339 = vld [vmem:[#allocation5 + $0x1e0] sm:$0xff]
        %v340 = vld [vmem:[#allocation5 + $0x1e8] sm:$0xff]
        %v341 = vld [vmem:[#allocation5 + $0x1f0] sm:$0xff]
        %v342 = vld [vmem:[#allocation5 + $0x1f8] sm:$0xff]
        %v343 = vld [vmem:[#allocation5 + $0x200] sm:$0xff]
        %v344 = vld [vmem:[#allocation5 + $0x208] sm:$0xff]
        %v345 = vld [vmem:[#allocation5 + $0x210] sm:$0xff]
        %v346 = vld [vmem:[#allocation5 + $0x218] sm:$0xff]
        %v347 = vld [vmem:[#allocation5 + $0x220] sm:$0xff]
        %v348 = vld [vmem:[#allocation5 + $0x228] sm:$0xff]
        %v349 = vld [vmem:[#allocation5 + $0x230] sm:$0xff]
        %v350 = vld [vmem:[#allocation5 + $0x238] sm:$0xff]
        %v351 = vld [vmem:[#allocation5 + $0x240] sm:$0xff]
        %v352 = vld [vmem:[#allocation5 + $0x248] sm:$0xff]
        %v353 = vld [vmem:[#allocation5 + $0x250] sm:$0xff]
        %v354 = vld [vmem:[#allocation5 + $0x258] sm:$0xff]
        %v355 = vld [vmem:[#allocation5 + $0x260] sm:$0xff]
        %v356 = vld [vmem:[#allocation5 + $0x268] sm:$0xff]
        %v357 = vld [vmem:[#allocation5 + $0x270] sm:$0xff]
        %v358 = vld [vmem:[#allocation5 + $0x278] sm:$0xff]
        %v359 = vld [vmem:[#allocation5 + $0x280] sm:$0xff]
        %v360 = vld [vmem:[#allocation5 + $0x288] sm:$0xff]
        %v361 = vld [vmem:[#allocation5 + $0x290] sm:$0xff]
        %v362 = vld [vmem:[#allocation5 + $0x298] sm:$0xff]
        %v363 = vld [vmem:[#allocation5 + $0x2a0] sm:$0xff]
        %v364 = vld [vmem:[#allocation5 + $0x2a8] sm:$0xff]
        %v365 = vld [vmem:[#allocation5 + $0x2b0] sm:$0xff]
        %v366 = vld [vmem:[#allocation5 + $0x2b8] sm:$0xff]
        %v367 = vld [vmem:[#allocation5 + $0x2c0] sm:$0xff]
        %v368 = vld [vmem:[#allocation5 + $0x2c8] sm:$0xff]
        %v369 = vld [vmem:[#allocation5 + $0x2d0] sm:$0xff]
        %v370 = vld [vmem:[#allocation5 + $0x2d8] sm:$0xff]
        %v371 = vld [vmem:[#allocation5 + $0x2e0] sm:$0xff]
        %v372 = vld [vmem:[#allocation5 + $0x2e8] sm:$0xff]
        %v373 = vld [vmem:[#allocation5 + $0x2f0] sm:$0xff]
        %v374 = vld [vmem:[#allocation5 + $0x2f8] sm:$0xff]
        %v375 = vld [vmem:[#allocation5 + $0x300] sm:$0xff]
        %v376 = vld [vmem:[#allocation5 + $0x308] sm:$0xff]
        %v377 = vld [vmem:[#allocation5 + $0x310] sm:$0xff]
        %v378 = vld [vmem:[#allocation5 + $0x318] sm:$0xff]
        %v379 = vld [vmem:[#allocation5 + $0x320] sm:$0xff]
        %v380 = vld [vmem:[#allocation5 + $0x328] sm:$0xff]
        %v381 = vld [vmem:[#allocation5 + $0x330] sm:$0xff]
        %v382 = vld [vmem:[#allocation5 + $0x338] sm:$0xff]
        %v383 = vld [vmem:[#allocation5 + $0x340] sm:$0xff]
        %v384 = vld [vmem:[#allocation5 + $0x348] sm:$0xff]
        %v385 = vld [vmem:[#allocation5 + $0x350] sm:$0xff]
        %v386 = vld [vmem:[#allocation5 + $0x358] sm:$0xff]
        %v387 = vld [vmem:[#allocation5 + $0x360] sm:$0xff]
        %v388 = vld [vmem:[#allocation5 + $0x368] sm:$0xff]
        %v389 = vld [vmem:[#allocation5 + $0x370] sm:$0xff]
        %v390 = vld [vmem:[#allocation5 + $0x378] sm:$0xff]
        %v391 = vld [vmem:[#allocation5 + $0x380] sm:$0xff]
        %v392 = vld [vmem:[#allocation5 + $0x388] sm:$0xff]
        %v393 = vld [vmem:[#allocation5 + $0x390] sm:$0xff]
        %v394 = vld [vmem:[#allocation5 + $0x398] sm:$0xff]
        %v395 = vld [vmem:[#allocation5 + $0x3a0] sm:$0xff]
        %v396 = vld [vmem:[#allocation5 + $0x3a8] sm:$0xff]
        %v397 = vld [vmem:[#allocation5 + $0x3b0] sm:$0xff]
        %v398 = vld [vmem:[#allocation5 + $0x3b8] sm:$0xff]
        %v399 = vld [vmem:[#allocation5 + $0x3c0] sm:$0xff]
        %v400 = vld [vmem:[#allocation5 + $0x3c8] sm:$0xff]
        %v401 = vld [vmem:[#allocation5 + $0x3d0] sm:$0xff]
        %v402 = vld [vmem:[#allocation5 + $0x3d8] sm:$0xff]
        %v403 = vld [vmem:[#allocation5 + $0x3e0] sm:$0xff]
        %v404 = vld [vmem:[#allocation5 + $0x3e8] sm:$0xff]
        %v405 = vld [vmem:[#allocation5 + $0x3f0] sm:$0xff]
        %v406 = vld [vmem:[#allocation5 + $0x3f8] sm:$0xff]
        %v407 = vld [vmem:[%s2] sm:$0xf]
        %v409 = vlaneseq
        %v410 = vshrl.u32 %v409, 7
        %v411 = vsub.s32 0, %v410
        %v412 = vrot.slane %v407, %v411
        %v413 = vlaneseq
        %v414 = vshrl.u32 %v413, 7
        %v415 = vsub.s32 1, %v414
        %v416 = vrot.slane %v407, %v415
        %v417 = vlaneseq
        %v418 = vshrl.u32 %v417, 7
        %v419 = vsub.s32 2, %v418
        %v420 = vrot.slane %v407, %v419
        %v421 = vlaneseq
        %v422 = vshrl.u32 %v421, 7
        %v423 = vsub.s32 3, %v422
        %v424 = vrot.slane %v407, %v423
        %429 = vmatprep.subr.mxu0 %v280
        %430 = vmatpush1.msra.mxu0 %v279
        %431 = vmatprep.subr.mxu0 %v284
        %432 = vmatpush1.msra.mxu0 %v283
        %433 = vmatprep.subr.mxu0 %v288
        %434 = vmatpush1.msra.mxu0 %v287
        %435 = vmatprep.subr.mxu0 %v292
        %436 = vmatpush1.msra.mxu0 %v291
        %437 = vmatprep.subr.mxu0 %v296
        %438 = vmatpush1.msra.mxu0 %v295
        %439 = vmatprep.subr.mxu0 %v300
        %440 = vmatpush1.msra.mxu0 %v299
        %441 = vmatprep.subr.mxu0 %v304
        %442 = vmatpush1.msra.mxu0 %v303
        %443 = vmatprep.subr.mxu0 %v308
        %444 = vmatpush1.msra.mxu0 %v307
        %445 = vmatprep.subr.mxu0 %v312
        %446 = vmatpush1.msra.mxu0 %v311
        %447 = vmatprep.subr.mxu0 %v316
        %448 = vmatpush1.msra.mxu0 %v315
        %449 = vmatprep.subr.mxu0 %v320
        %450 = vmatpush1.msra.mxu0 %v319
        %451 = vmatprep.subr.mxu0 %v324
        %452 = vmatpush1.msra.mxu0 %v323
        %453 = vmatprep.subr.mxu0 %v328
        %454 = vmatpush1.msra.mxu0 %v327
        %455 = vmatprep.subr.mxu0 %v332
        %456 = vmatpush1.msra.mxu0 %v331
        %457 = vmatprep.subr.mxu0 %v336
        %458 = vmatpush1.msra.mxu0 %v335
        %459 = vmatprep.subr.mxu0 %v340
        %460 = vmatpush1.msra.mxu0 %v339
        %461 = vmatprep.subr.mxu0 %v344
        %462 = vmatpush1.msra.mxu0 %v343
        %463 = vmatprep.subr.mxu0 %v348
        %464 = vmatpush1.msra.mxu0 %v347
        %465 = vmatprep.subr.mxu0 %v352
        %466 = vmatpush1.msra.mxu0 %v351
        %467 = vmatprep.subr.mxu0 %v356
        %468 = vmatpush1.msra.mxu0 %v355
        %469 = vmatprep.subr.mxu0 %v360
        %470 = vmatpush1.msra.mxu0 %v359
        %471 = vmatprep.subr.mxu0 %v364
        %472 = vmatpush1.msra.mxu0 %v363
        %473 = vmatprep.subr.mxu0 %v368
        %474 = vmatpush1.msra.mxu0 %v367
        %475 = vmatprep.subr.mxu0 %v372
        %476 = vmatpush1.msra.mxu0 %v371
        %477 = vmatprep.subr.mxu0 %v376
        %478 = vmatpush1.msra.mxu0 %v375
        %479 = vmatprep.subr.mxu0 %v380
        %480 = vmatpush1.msra.mxu0 %v379
        %481 = vmatprep.subr.mxu0 %v384
        %482 = vmatpush1.msra.mxu0 %v383
        %483 = vmatprep.subr.mxu0 %v388
        %484 = vmatpush1.msra.mxu0 %v387
        %485 = vmatprep.subr.mxu0 %v392
        %486 = vmatpush1.msra.mxu0 %v391
        %487 = vmatprep.subr.mxu0 %v396
        %488 = vmatpush1.msra.mxu0 %v395
        %489 = vmatprep.subr.mxu0 %v400
        %490 = vmatpush1.msra.mxu0 %v399
        %491 = vmatprep.subr.mxu0 %v404
        %492 = vmatpush1.msra.mxu0 %v403
        %493 = vmatprep.mubr.f32.mxu0 %v276
        %494 = vmatmul.mubr.f32.gmra.mrb[0].mxu0 %v275
        %v495 = vpop.f32.mrb[0].mxu0
        %v496 = vadd.f32 %v412, %v495
        %v497 = vpop.f32.mrb[0].mxu0
        %v498 = vadd.f32 %v416, %v497
        %499 = vmatprep.mubr.f32.mxu0 %v278
        %500 = vmatmul.mubr.f32.gmra.mrb[0].mxu0 %v277
        %v501 = vpop.f32.mrb[0].mxu0
        %v502 = vadd.f32 %v412, %v501
        %v503 = vpop.f32.mrb[0].mxu0
        %v504 = vadd.f32 %v416, %v503
        %505 = vdwg.mxu0
        %506 = vmatprep.subr.mxu0 %v282
        %507 = vmatpush1.msra.mxu0 %v281
        %508 = vmatprep.subr.mxu0 %v286
        %509 = vmatpush1.msra.mxu0 %v285
        %510 = vmatprep.subr.mxu0 %v290
        %511 = vmatpush1.msra.mxu0 %v289
        %512 = vmatprep.subr.mxu0 %v294
        %513 = vmatpush1.msra.mxu0 %v293
        %514 = vmatprep.subr.mxu0 %v298
        %515 = vmatpush1.msra.mxu0 %v297
        %516 = vmatprep.subr.mxu0 %v302
        %517 = vmatpush1.msra.mxu0 %v301
        %518 = vmatprep.subr.mxu0 %v306
        %519 = vmatpush1.msra.mxu0 %v305
        %520 = vmatprep.subr.mxu0 %v310
        %521 = vmatpush1.msra.mxu0 %v309
        %522 = vmatprep.subr.mxu0 %v314
        %523 = vmatpush1.msra.mxu0 %v313
        %524 = vmatprep.subr.mxu0 %v318
        %525 = vmatpush1.msra.mxu0 %v317
        %526 = vmatprep.subr.mxu0 %v322
        %527 = vmatpush1.msra.mxu0 %v321
        %528 = vmatprep.subr.mxu0 %v326
        %529 = vmatpush1.msra.mxu0 %v325
        %530 = vmatprep.subr.mxu0 %v330
        %531 = vmatpush1.msra.mxu0 %v329
        %532 = vmatprep.subr.mxu0 %v334
        %533 = vmatpush1.msra.mxu0 %v333
        %534 = vmatprep.subr.mxu0 %v338
        %535 = vmatpush1.msra.mxu0 %v337
        %536 = vmatprep.subr.mxu0 %v342
        %537 = vmatpush1.msra.mxu0 %v341
        %538 = vmatprep.subr.mxu0 %v346
        %539 = vmatpush1.msra.mxu0 %v345
        %540 = vmatprep.subr.mxu0 %v350
        %541 = vmatpush1.msra.mxu0 %v349
        %542 = vmatprep.subr.mxu0 %v354
        %543 = vmatpush1.msra.mxu0 %v353
        %544 = vmatprep.subr.mxu0 %v358
        %545 = vmatpush1.msra.mxu0 %v357
        %546 = vmatprep.subr.mxu0 %v362
        %547 = vmatpush1.msra.mxu0 %v361
        %548 = vmatprep.subr.mxu0 %v366
        %549 = vmatpush1.msra.mxu0 %v365
        %550 = vmatprep.subr.mxu0 %v370
        %551 = vmatpush1.msra.mxu0 %v369
        %552 = vmatprep.subr.mxu0 %v374
        %553 = vmatpush1.msra.mxu0 %v373
        %554 = vmatprep.subr.mxu0 %v378
        %555 = vmatpush1.msra.mxu0 %v377
        %556 = vmatprep.subr.mxu0 %v382
        %557 = vmatpush1.msra.mxu0 %v381
        %558 = vmatprep.subr.mxu0 %v386
        %559 = vmatpush1.msra.mxu0 %v385
        %560 = vmatprep.subr.mxu0 %v390
        %561 = vmatpush1.msra.mxu0 %v389
        %562 = vmatprep.subr.mxu0 %v394
        %563 = vmatpush1.msra.mxu0 %v393
        %564 = vmatprep.subr.mxu0 %v398
        %565 = vmatpush1.msra.mxu0 %v397
        %566 = vmatprep.subr.mxu0 %v402
        %567 = vmatpush1.msra.mxu0 %v401
        %568 = vmatprep.subr.mxu0 %v406
        %569 = vmatpush1.msra.mxu0 %v405
        %570 = vmatprep.mubr.f32.mxu0 %v276
        %571 = vmatmul.mubr.f32.gmra.mrb[0].mxu0 %v275
        %v572 = vpop.f32.mrb[0].mxu0
        %v573 = vadd.f32 %v420, %v572
        %v574 = vpop.f32.mrb[0].mxu0
        %v575 = vadd.f32 %v424, %v574
        %576 = vmatprep.mubr.f32.mxu0 %v278
        %577 = vmatmul.mubr.f32.gmra.mrb[0].mxu0 %v277
        %v578 = vpop.f32.mrb[0].mxu0
        %v579 = vadd.f32 %v420, %v578
        %v580 = vpop.f32.mrb[0].mxu0
        %v581 = vadd.f32 %v424, %v580
        %582 = vdwg.mxu0
        %v583 = vmax.f32 %v496, 0.0
        %v584 = vmax.f32 %v498, 0.0
        %v585 = vmax.f32 %v573, 0.0
        %v586 = vmax.f32 %v575, 0.0
        %v587 = vmax.f32 %v502, 0.0
        %v588 = vmax.f32 %v504, 0.0
        %v589 = vmax.f32 %v579, 0.0
        %v590 = vmax.f32 %v581, 0.0
        %v591 = vld [vmem:[#allocation7] sm:$0xff]
        %v592 = vld [vmem:[#allocation7 + $0x8] sm:$0xff]
        %v593 = vld [vmem:[#allocation7 + $0x10] sm:$0xff]
        %v594 = vld [vmem:[#allocation7 + $0x18] sm:$0xff]
        %v595 = vld [vmem:[#allocation7 + $0x20] sm:$0xff]
        %v596 = vld [vmem:[#allocation7 + $0x28] sm:$0xff]
        %v597 = vld [vmem:[#allocation7 + $0x30] sm:$0xff]
        %v598 = vld [vmem:[#allocation7 + $0x38] sm:$0xff]
        %v599 = vld [vmem:[#allocation7 + $0x40] sm:$0xff]
        %v600 = vld [vmem:[#allocation7 + $0x48] sm:$0xff]
        %v601 = vld [vmem:[#allocation7 + $0x50] sm:$0xff]
        %v602 = vld [vmem:[#allocation7 + $0x58] sm:$0xff]
        %v603 = vld [vmem:[#allocation7 + $0x60] sm:$0xff]
        %v604 = vld [vmem:[#allocation7 + $0x68] sm:$0xff]
        %v605 = vld [vmem:[#allocation7 + $0x70] sm:$0xff]
        %v606 = vld [vmem:[#allocation7 + $0x78] sm:$0xff]
        %v607 = vld [vmem:[#allocation7 + $0x80] sm:$0xff]
        %v608 = vld [vmem:[#allocation7 + $0x88] sm:$0xff]
        %v609 = vld [vmem:[#allocation7 + $0x90] sm:$0xff]
        %v610 = vld [vmem:[#allocation7 + $0x98] sm:$0xff]
        %v611 = vld [vmem:[#allocation7 + $0xa0] sm:$0xff]
        %v612 = vld [vmem:[#allocation7 + $0xa8] sm:$0xff]
        %v613 = vld [vmem:[#allocation7 + $0xb0] sm:$0xff]
        %v614 = vld [vmem:[#allocation7 + $0xb8] sm:$0xff]
        %v615 = vld [vmem:[#allocation7 + $0xc0] sm:$0xff]
        %v616 = vld [vmem:[#allocation7 + $0xc8] sm:$0xff]
        %v617 = vld [vmem:[#allocation7 + $0xd0] sm:$0xff]
        %v618 = vld [vmem:[#allocation7 + $0xd8] sm:$0xff]
        %v619 = vld [vmem:[#allocation7 + $0xe0] sm:$0xff]
        %v620 = vld [vmem:[#allocation7 + $0xe8] sm:$0xff]
        %v621 = vld [vmem:[#allocation7 + $0xf0] sm:$0xff]
        %v622 = vld [vmem:[#allocation7 + $0xf8] sm:$0xff]
        %v623 = vld [vmem:[#allocation7 + $0x100] sm:$0xff]
        %v624 = vld [vmem:[#allocation7 + $0x108] sm:$0xff]
        %v625 = vld [vmem:[#allocation7 + $0x110] sm:$0xff]
        %v626 = vld [vmem:[#allocation7 + $0x118] sm:$0xff]
        %v627 = vld [vmem:[#allocation7 + $0x120] sm:$0xff]
        %v628 = vld [vmem:[#allocation7 + $0x128] sm:$0xff]
        %v629 = vld [vmem:[#allocation7 + $0x130] sm:$0xff]
        %v630 = vld [vmem:[#allocation7 + $0x138] sm:$0xff]
        %v631 = vld [vmem:[#allocation7 + $0x140] sm:$0xff]
        %v632 = vld [vmem:[#allocation7 + $0x148] sm:$0xff]
        %v633 = vld [vmem:[#allocation7 + $0x150] sm:$0xff]
        %v634 = vld [vmem:[#allocation7 + $0x158] sm:$0xff]
        %v635 = vld [vmem:[#allocation7 + $0x160] sm:$0xff]
        %v636 = vld [vmem:[#allocation7 + $0x168] sm:$0xff]
        %v637 = vld [vmem:[#allocation7 + $0x170] sm:$0xff]
        %v638 = vld [vmem:[#allocation7 + $0x178] sm:$0xff]
        %v639 = vld [vmem:[#allocation7 + $0x180] sm:$0xff]
        %v640 = vld [vmem:[#allocation7 + $0x188] sm:$0xff]
        %v641 = vld [vmem:[#allocation7 + $0x190] sm:$0xff]
        %v642 = vld [vmem:[#allocation7 + $0x198] sm:$0xff]
        %v643 = vld [vmem:[#allocation7 + $0x1a0] sm:$0xff]
        %v644 = vld [vmem:[#allocation7 + $0x1a8] sm:$0xff]
        %v645 = vld [vmem:[#allocation7 + $0x1b0] sm:$0xff]
        %v646 = vld [vmem:[#allocation7 + $0x1b8] sm:$0xff]
        %v647 = vld [vmem:[#allocation7 + $0x1c0] sm:$0xff]
        %v648 = vld [vmem:[#allocation7 + $0x1c8] sm:$0xff]
        %v649 = vld [vmem:[#allocation7 + $0x1d0] sm:$0xff]
        %v650 = vld [vmem:[#allocation7 + $0x1d8] sm:$0xff]
        %v651 = vld [vmem:[#allocation7 + $0x1e0] sm:$0xff]
        %v652 = vld [vmem:[#allocation7 + $0x1e8] sm:$0xff]
        %v653 = vld [vmem:[#allocation7 + $0x1f0] sm:$0xff]
        %v654 = vld [vmem:[#allocation7 + $0x1f8] sm:$0xff]
        %v655 = vld [vmem:[#allocation7 + $0x200] sm:$0xff]
        %v656 = vld [vmem:[#allocation7 + $0x208] sm:$0xff]
        %v657 = vld [vmem:[#allocation7 + $0x210] sm:$0xff]
        %v658 = vld [vmem:[#allocation7 + $0x218] sm:$0xff]
        %v659 = vld [vmem:[#allocation7 + $0x220] sm:$0xff]
        %v660 = vld [vmem:[#allocation7 + $0x228] sm:$0xff]
        %v661 = vld [vmem:[#allocation7 + $0x230] sm:$0xff]
        %v662 = vld [vmem:[#allocation7 + $0x238] sm:$0xff]
        %v663 = vld [vmem:[#allocation7 + $0x240] sm:$0xff]
        %v664 = vld [vmem:[#allocation7 + $0x248] sm:$0xff]
        %v665 = vld [vmem:[#allocation7 + $0x250] sm:$0xff]
        %v666 = vld [vmem:[#allocation7 + $0x258] sm:$0xff]
        %v667 = vld [vmem:[#allocation7 + $0x260] sm:$0xff]
        %v668 = vld [vmem:[#allocation7 + $0x268] sm:$0xff]
        %v669 = vld [vmem:[#allocation7 + $0x270] sm:$0xff]
        %v670 = vld [vmem:[#allocation7 + $0x278] sm:$0xff]
        %v671 = vld [vmem:[#allocation7 + $0x280] sm:$0xff]
        %v672 = vld [vmem:[#allocation7 + $0x288] sm:$0xff]
        %v673 = vld [vmem:[#allocation7 + $0x290] sm:$0xff]
        %v674 = vld [vmem:[#allocation7 + $0x298] sm:$0xff]
        %v675 = vld [vmem:[#allocation7 + $0x2a0] sm:$0xff]
        %v676 = vld [vmem:[#allocation7 + $0x2a8] sm:$0xff]
        %v677 = vld [vmem:[#allocation7 + $0x2b0] sm:$0xff]
        %v678 = vld [vmem:[#allocation7 + $0x2b8] sm:$0xff]
        %v679 = vld [vmem:[#allocation7 + $0x2c0] sm:$0xff]
        %v680 = vld [vmem:[#allocation7 + $0x2c8] sm:$0xff]
        %v681 = vld [vmem:[#allocation7 + $0x2d0] sm:$0xff]
        %v682 = vld [vmem:[#allocation7 + $0x2d8] sm:$0xff]
        %v683 = vld [vmem:[#allocation7 + $0x2e0] sm:$0xff]
        %v684 = vld [vmem:[#allocation7 + $0x2e8] sm:$0xff]
        %v685 = vld [vmem:[#allocation7 + $0x2f0] sm:$0xff]
        %v686 = vld [vmem:[#allocation7 + $0x2f8] sm:$0xff]
        %v687 = vld [vmem:[#allocation7 + $0x300] sm:$0xff]
        %v688 = vld [vmem:[#allocation7 + $0x308] sm:$0xff]
        %v689 = vld [vmem:[#allocation7 + $0x310] sm:$0xff]
        %v690 = vld [vmem:[#allocation7 + $0x318] sm:$0xff]
        %v691 = vld [vmem:[#allocation7 + $0x320] sm:$0xff]
        %v692 = vld [vmem:[#allocation7 + $0x328] sm:$0xff]
        %v693 = vld [vmem:[#allocation7 + $0x330] sm:$0xff]
        %v694 = vld [vmem:[#allocation7 + $0x338] sm:$0xff]
        %v695 = vld [vmem:[#allocation7 + $0x340] sm:$0xff]
        %v696 = vld [vmem:[#allocation7 + $0x348] sm:$0xff]
        %v697 = vld [vmem:[#allocation7 + $0x350] sm:$0xff]
        %v698 = vld [vmem:[#allocation7 + $0x358] sm:$0xff]
        %v699 = vld [vmem:[#allocation7 + $0x360] sm:$0xff]
        %v700 = vld [vmem:[#allocation7 + $0x368] sm:$0xff]
        %v701 = vld [vmem:[#allocation7 + $0x370] sm:$0xff]
        %v702 = vld [vmem:[#allocation7 + $0x378] sm:$0xff]
        %v703 = vld [vmem:[#allocation7 + $0x380] sm:$0xff]
        %v704 = vld [vmem:[#allocation7 + $0x388] sm:$0xff]
        %v705 = vld [vmem:[#allocation7 + $0x390] sm:$0xff]
        %v706 = vld [vmem:[#allocation7 + $0x398] sm:$0xff]
        %v707 = vld [vmem:[#allocation7 + $0x3a0] sm:$0xff]
        %v708 = vld [vmem:[#allocation7 + $0x3a8] sm:$0xff]
        %v709 = vld [vmem:[#allocation7 + $0x3b0] sm:$0xff]
        %v710 = vld [vmem:[#allocation7 + $0x3b8] sm:$0xff]
        %v711 = vld [vmem:[#allocation7 + $0x3c0] sm:$0xff]
        %v712 = vld [vmem:[#allocation7 + $0x3c8] sm:$0xff]
        %v713 = vld [vmem:[#allocation7 + $0x3d0] sm:$0xff]
        %v714 = vld [vmem:[#allocation7 + $0x3d8] sm:$0xff]
        %v715 = vld [vmem:[#allocation7 + $0x3e0] sm:$0xff]
        %v716 = vld [vmem:[#allocation7 + $0x3e8] sm:$0xff]
        %v717 = vld [vmem:[#allocation7 + $0x3f0] sm:$0xff]
        %v718 = vld [vmem:[#allocation7 + $0x3f8] sm:$0xff]
        %v719 = vld [vmem:[%s4] sm:$0x3]
        %v721 = vlaneseq
        %v722 = vshrl.u32 %v721, 7
        %v723 = vsub.s32 0, %v722
        %v724 = vrot.slane %v719, %v723
        %v725 = vlaneseq
        %v726 = vshrl.u32 %v725, 7
        %v727 = vsub.s32 1, %v726
        %v728 = vrot.slane %v719, %v727
        %731 = vmatprep.subr.mxu0 %v592
        %732 = vmatpush1.msra.mxu0 %v591
        %733 = vmatprep.subr.mxu0 %v594
        %734 = vmatpush1.msra.mxu0 %v593
        %735 = vmatprep.subr.mxu0 %v596
        %736 = vmatpush1.msra.mxu0 %v595
        %737 = vmatprep.subr.mxu0 %v598
        %738 = vmatpush1.msra.mxu0 %v597
        %739 = vmatprep.subr.mxu0 %v600
        %740 = vmatpush1.msra.mxu0 %v599
        %741 = vmatprep.subr.mxu0 %v602
        %742 = vmatpush1.msra.mxu0 %v601
        %743 = vmatprep.subr.mxu0 %v604
        %744 = vmatpush1.msra.mxu0 %v603
        %745 = vmatprep.subr.mxu0 %v606
        %746 = vmatpush1.msra.mxu0 %v605
        %747 = vmatprep.subr.mxu0 %v608
        %748 = vmatpush1.msra.mxu0 %v607
        %749 = vmatprep.subr.mxu0 %v610
        %750 = vmatpush1.msra.mxu0 %v609
        %751 = vmatprep.subr.mxu0 %v612
        %752 = vmatpush1.msra.mxu0 %v611
        %753 = vmatprep.subr.mxu0 %v614
        %754 = vmatpush1.msra.mxu0 %v613
        %755 = vmatprep.subr.mxu0 %v616
        %756 = vmatpush1.msra.mxu0 %v615
        %757 = vmatprep.subr.mxu0 %v618
        %758 = vmatpush1.msra.mxu0 %v617
        %759 = vmatprep.subr.mxu0 %v620
        %760 = vmatpush1.msra.mxu0 %v619
        %761 = vmatprep.subr.mxu0 %v622
        %762 = vmatpush1.msra.mxu0 %v621
        %763 = vmatprep.subr.mxu0 %v624
        %764 = vmatpush1.msra.mxu0 %v623
        %765 = vmatprep.subr.mxu0 %v626
        %766 = vmatpush1.msra.mxu0 %v625
        %767 = vmatprep.subr.mxu0 %v628
        %768 = vmatpush1.msra.mxu0 %v627
        %769 = vmatprep.subr.mxu0 %v630
        %770 = vmatpush1.msra.mxu0 %v629
        %771 = vmatprep.subr.mxu0 %v632
        %772 = vmatpush1.msra.mxu0 %v631
        %773 = vmatprep.subr.mxu0 %v634
        %774 = vmatpush1.msra.mxu0 %v633
        %775 = vmatprep.subr.mxu0 %v636
        %776 = vmatpush1.msra.mxu0 %v635
        %777 = vmatprep.subr.mxu0 %v638
        %778 = vmatpush1.msra.mxu0 %v637
        %779 = vmatprep.subr.mxu0 %v640
        %780 = vmatpush1.msra.mxu0 %v639
        %781 = vmatprep.subr.mxu0 %v642
        %782 = vmatpush1.msra.mxu0 %v641
        %783 = vmatprep.subr.mxu0 %v644
        %784 = vmatpush1.msra.mxu0 %v643
        %785 = vmatprep.subr.mxu0 %v646
        %786 = vmatpush1.msra.mxu0 %v645
        %787 = vmatprep.subr.mxu0 %v648
        %788 = vmatpush1.msra.mxu0 %v647
        %789 = vmatprep.subr.mxu0 %v650
        %790 = vmatpush1.msra.mxu0 %v649
        %791 = vmatprep.subr.mxu0 %v652
        %792 = vmatpush1.msra.mxu0 %v651
        %793 = vmatprep.subr.mxu0 %v654
        %794 = vmatpush1.msra.mxu0 %v653
        %795 = vmatprep.mubr.f32.mxu0 %v584
        %796 = vmatmul.mubr.f32.gmra.mrb[0].mxu0 %v583
        %v797 = vpop.f32.mrb[0].mxu0
        %v798 = vadd.f32 %v724, %v797
        %v799 = vpop.f32.mrb[0].mxu0
        %v800 = vadd.f32 %v728, %v799
        %801 = vmatprep.mubr.f32.mxu0 %v588
        %802 = vmatmul.mubr.f32.gmra.mrb[0].mxu0 %v587
        %v803 = vpop.f32.mrb[0].mxu0
        %v804 = vadd.f32 %v724, %v803
        %v805 = vpop.f32.mrb[0].mxu0
        %v806 = vadd.f32 %v728, %v805
        %807 = vdwg.mxu0
        %808 = vmatprep.subr.mxu0 %v656
        %809 = vmatpush1.msra.mxu0 %v655
        %810 = vmatprep.subr.mxu0 %v658
        %811 = vmatpush1.msra.mxu0 %v657
        %812 = vmatprep.subr.mxu0 %v660
        %813 = vmatpush1.msra.mxu0 %v659
        %814 = vmatprep.subr.mxu0 %v662
        %815 = vmatpush1.msra.mxu0 %v661
        %816 = vmatprep.subr.mxu0 %v664
        %817 = vmatpush1.msra.mxu0 %v663
        %818 = vmatprep.subr.mxu0 %v666
        %819 = vmatpush1.msra.mxu0 %v665
        %820 = vmatprep.subr.mxu0 %v668
        %821 = vmatpush1.msra.mxu0 %v667
        %822 = vmatprep.subr.mxu0 %v670
        %823 = vmatpush1.msra.mxu0 %v669
        %824 = vmatprep.subr.mxu0 %v672
        %825 = vmatpush1.msra.mxu0 %v671
        %826 = vmatprep.subr.mxu0 %v674
        %827 = vmatpush1.msra.mxu0 %v673
        %828 = vmatprep.subr.mxu0 %v676
        %829 = vmatpush1.msra.mxu0 %v675
        %830 = vmatprep.subr.mxu0 %v678
        %831 = vmatpush1.msra.mxu0 %v677
        %832 = vmatprep.subr.mxu0 %v680
        %833 = vmatpush1.msra.mxu0 %v679
        %834 = vmatprep.subr.mxu0 %v682
        %835 = vmatpush1.msra.mxu0 %v681
        %836 = vmatprep.subr.mxu0 %v684
        %837 = vmatpush1.msra.mxu0 %v683
        %838 = vmatprep.subr.mxu0 %v686
        %839 = vmatpush1.msra.mxu0 %v685
        %840 = vmatprep.subr.mxu0 %v688
        %841 = vmatpush1.msra.mxu0 %v687
        %842 = vmatprep.subr.mxu0 %v690
        %843 = vmatpush1.msra.mxu0 %v689
        %844 = vmatprep.subr.mxu0 %v692
        %845 = vmatpush1.msra.mxu0 %v691
        %846 = vmatprep.subr.mxu0 %v694
        %847 = vmatpush1.msra.mxu0 %v693
        %848 = vmatprep.subr.mxu0 %v696
        %849 = vmatpush1.msra.mxu0 %v695
        %850 = vmatprep.subr.mxu0 %v698
        %851 = vmatpush1.msra.mxu0 %v697
        %852 = vmatprep.subr.mxu0 %v700
        %853 = vmatpush1.msra.mxu0 %v699
        %854 = vmatprep.subr.mxu0 %v702
        %855 = vmatpush1.msra.mxu0 %v701
        %856 = vmatprep.subr.mxu0 %v704
        %857 = vmatpush1.msra.mxu0 %v703
        %858 = vmatprep.subr.mxu0 %v706
        %859 = vmatpush1.msra.mxu0 %v705
        %860 = vmatprep.subr.mxu0 %v708
        %861 = vmatpush1.msra.mxu0 %v707
        %862 = vmatprep.subr.mxu0 %v710
        %863 = vmatpush1.msra.mxu0 %v709
        %864 = vmatprep.subr.mxu0 %v712
        %865 = vmatpush1.msra.mxu0 %v711
        %866 = vmatprep.subr.mxu0 %v714
        %867 = vmatpush1.msra.mxu0 %v713
        %868 = vmatprep.subr.mxu0 %v716
        %869 = vmatpush1.msra.mxu0 %v715
        %870 = vmatprep.subr.mxu0 %v718
        %871 = vmatpush1.msra.mxu0 %v717
        %872 = vmatprep.mubr.f32.mxu0 %v586
        %873 = vmatmul.mubr.f32.gmra.mrb[0].mxu0 %v585
        %v874 = vpop.f32.mrb[0].mxu0
        %v875 = vadd.f32 %v798, %v874
        %v876 = vpop.f32.mrb[0].mxu0
        %v877 = vadd.f32 %v800, %v876
        %878 = vmatprep.mubr.f32.mxu0 %v590
        %879 = vmatmul.mubr.f32.gmra.mrb[0].mxu0 %v589
        %v880 = vpop.f32.mrb[0].mxu0
        %v881 = vadd.f32 %v804, %v880
        %v882 = vpop.f32.mrb[0].mxu0
        %v883 = vadd.f32 %v806, %v882
        %884 = vdwg.mxu0
        %885 = vst [vmem:[%s272] sm:$0xff] %v875
        %886 = vst [vmem:[%s272 + $0x8] sm:$0xff] %v877
        %887 = vst [vmem:[%s272 + $0x10] sm:$0xff] %v881
        %888 = vst [vmem:[%s272 + $0x18] sm:$0xff] %v883
        %s889 = sand.u32 %s141, 1
        %s890 = scalar_lea.sflag [#allocation4], %s889
        %s891 = sand.u32 %s141, 1
        %s892 = smul.addr %s891, 32
        %s893 = scalar_lea.vmem [#allocation8], %s892
        // Predicated region
        $region53: #{tpu_custom_call.1} parent=39 // pred_check
          %p894 = pneg %p151
        $region54: #{tpu_custom_call.1} parent=39 // pred_check_branch
          %896 = sbr.rel (%p894) target = $region56
        $region55: #{tpu_custom_call.1} parent=39 // pred_region
          %s897 = smul.u32 2, %s23
          %s899 = ssub.s32 512, 512
          %900 = vsyncadd %s890, %s899
          %s901 = smul.addr %s897, 2
          %s902 = smul.addr %s901, 128
          %s903 = scalar_lea.hbm %s5, %s902
          %s904 = sshll.u32 %s893, 4
          %s905 = int_to_ptr.vmem [resolvable:$true] %s904
          %910 = dma.vmem_to_hbm [thread:$0]  %s905, 512, %s903, %s890, 256, 256, 16
        $region56: #{tpu_custom_call.1} parent=39 // pred_fallthru
          _
      $region40: #{tpu_custom_call.1} parent=5 // pred_fallthru
        _
      %p911 = scmp.le.s32.totalorder 2, %s18
      // Predicated region
      $region57: #{tpu_custom_call.1} parent=5 // pred_check
        %p912 = pneg %p911
      $region58: #{tpu_custom_call.1} parent=5 // pred_check_branch
        %914 = sbr.rel (%p912) target = $region60
      $region59: #{tpu_custom_call.1} parent=5 // pred_region
        %s915 = ssub.s32 %s18, 2
        // Predicated region
        $region61: #{tpu_custom_call.1} parent=59 // pred_check
          %p916 = pneg %p157
        $region62: #{tpu_custom_call.1} parent=59 // pred_check_branch
          %918 = sbr.rel (%p916) target = $region64
        $region63: #{tpu_custom_call.1} parent=59 // pred_region
          %s919 = sand.u32 %s142, 1
          %s920 = scalar_lea.sflag [#allocation4], %s919
          %s921 = sand.u32 %s142, 1
          %s922 = smul.addr %s921, 32
          %s923 = scalar_lea.vmem [#allocation8], %s922
          %924 = dma.done %s920, 512
        $region64: #{tpu_custom_call.1} parent=59 // pred_fallthru
          _
      $region60: #{tpu_custom_call.1} parent=5 // pred_fallthru
        _
    $region6: #{tpu_custom_call.1} parent=1 // loop_footer
      %s22 = sadd.s32 1, %s18
    $region7: #{tpu_custom_call.1} parent=1 // loop_footer_branch
      %17 = sbr.rel target = $region3
    $region8: #{tpu_custom_call.1} parent=1 // loop_exit
      _
    %925 = vsyncpa [#allocation3], 1
    %s926 = scalar_lea.sflag [#allocation3], 1
    %927 = vsyncpa %s926, 1
    %928 = vsyncpa [#allocation6], 1
    %929 = vsyncpa [#allocation4], 1
    %s930 = scalar_lea.sflag [#allocation4], 1
    %931 = vsyncpa %s930, 1

</llo_original>
